<compile_context>
chip_gen: v7x
topology: tpu7x:2x2x1
jax: 0.10.0
libtpu: 0.0.40
codegen_flags: <defaults>
</compile_context>

<pallas_src>
import jax
import jax.numpy as jnp
from jax.experimental import pallas as pl
from jax.experimental.pallas import tpu as pltpu


def _classification_kernel(x_ref, out_ref, acc_ref):
    l_idx = pl.program_id(1)

    @pl.when(l_idx == 0)
    def _():
        acc_ref[...] = jnp.zeros_like(acc_ref)

    # Partial sum over this L tile. (AdaptiveAvgPool1d(1) up to a 1/L positive
    # scale, which together with the monotonic softmax is irrelevant for argmax.)
    acc_ref[...] += jnp.sum(x_ref[...].astype(jnp.float32), axis=-1)   # (TN, C)

    @pl.when(l_idx == pl.num_programs(1) - 1)
    def _():
        s = acc_ref[...]                                               # (TN, C)
        c = s.shape[1]
        ids = jax.lax.broadcasted_iota(jnp.int32, s.shape, 1)          # (TN, C)
        m = jnp.max(s, axis=1, keepdims=True)                          # (TN, 1)
        masked = jnp.where(s >= m, ids, jnp.int32(c))                  # first max wins
        idx = jnp.min(masked, axis=1, keepdims=True)                   # (TN, 1)
        # Lane-dense store: broadcast the per-row class id across all 128 lanes.
        out_ref[...] = jnp.broadcast_to(idx, out_ref.shape)            # (TN, 128)


def _ceil_to(a: int, m: int) -> int:
    return ((a + m - 1) // m) * m


def classification_model(x, *, block_budget_bytes: int = 4 * 1024 * 1024):
    """argmax(softmax(adaptive_avg_pool1d(x, 1).squeeze(-1)), dim=1, keepdim=True)."""
    n, c, l = x.shape
    itemsize = jnp.dtype(x.dtype).itemsize

    # ---- pick the biggest block that fits ~block_budget_bytes (x2 dbl-buffer) ----
    row_bytes = c * l * itemsize                  # one full batch row (all C, all L)
    n8 = _ceil_to(n, 8)
    if 8 * row_bytes <= block_budget_bytes:
        # Whole L fits: grow TN (multiple of 8) instead — fewer, bigger DMAs.
        tn = min(n8, max(8, ((block_budget_bytes // row_bytes) // 8) * 8))
        tl = l
        lp = l
    else:
        # L must be tiled: keep TN at the sublane minimum, lane-align TL.
        tn = 8
        max_tl = block_budget_bytes // (tn * c * itemsize)
        tl = max(128, (max_tl // 128) * 128)      # multiple of 128 (lane axis)
        lp = _ceil_to(l, tl)                      # zero-pad L: sums unaffected
    n_pad = _ceil_to(n, tn)                       # multiple of tn by construction

    x_pad = x
    if (n_pad, lp) != (n, l):
        x_pad = jnp.pad(x, ((0, n_pad - n), (0, 0), (0, lp - l)))

    grid = (n_pad // tn, lp // tl)                # reduction (L) axis last

    out = pl.pallas_call(
        _classification_kernel,
        out_shape=jax.ShapeDtypeStruct((n_pad, 128), jnp.int32),
        grid_spec=pltpu.PrefetchScalarGridSpec(
            num_scalar_prefetch=0,
            grid=grid,
            in_specs=[pl.BlockSpec((tn, c, tl), lambda i, j: (i, 0, j))],
            out_specs=pl.BlockSpec((tn, 128), lambda i, j: (i, 0)),
            scratch_shapes=[pltpu.VMEM((tn, c), jnp.float32)],
        ),
        compiler_params=pltpu.CompilerParams(
            dimension_semantics=("parallel", "arbitrary"),
        ),
        cost_estimate=pl.CostEstimate(
            flops=2 * n_pad * c * lp,
            transcendentals=0,
            bytes_accessed=n_pad * c * lp * itemsize + n_pad * 128 * 4,
        ),
    )(x_pad)

    # Trim N padding and keep a single column -> (N, 1) int32.
    return out[:n, :1]


def _reference(x):
    pooled = jnp.mean(x, axis=-1)
    probs = jax.nn.softmax(pooled, axis=1)
    return jnp.argmax(probs, axis=1, keepdims=True).astype(jnp.int32)


if __name__ == "__main__":
    key = jax.random.PRNGKey(0)

    # Small shape matching the module's (N, C, L) input convention.
    x = jax.random.normal(key, (2, 4, 8), dtype=jnp.float32)
    out = jax.block_until_ready(classification_model(x))
    ref = jax.block_until_ready(_reference(x))
    assert out.shape == (2, 1), out.shape
    assert out.dtype == jnp.int32, out.dtype
    assert bool(jnp.all(out == ref)), (out, ref)

    # Exercise the multi-L-tile accumulator / pipelined path (small budget forces
    # tl=128/256 -> multiple reduction steps) while staying tiny.
    x2 = jax.random.normal(jax.random.PRNGKey(0), (4, 8, 512), dtype=jnp.float32)
    out2 = jax.block_until_ready(
        classification_model(x2, block_budget_bytes=64 * 1024))
    ref2 = jax.block_until_ready(_reference(x2))
    assert out2.shape == (4, 1), out2.shape
    assert bool(jnp.all(out2 == ref2)), (out2, ref2)

    # Exercise the grown-TN (full-L, multi-N-tile) path.
    x3 = jax.random.normal(jax.random.PRNGKey(1), (48, 16, 64), dtype=jnp.float32)
    out3 = jax.block_until_ready(
        classification_model(x3, block_budget_bytes=64 * 1024))
    ref3 = jax.block_until_ready(_reference(x3))
    assert out3.shape == (48, 1), out3.shape
    assert bool(jnp.all(out3 == ref3)), (out3, ref3)

    print("KERNEL_OK")
</pallas_src>

<mosaic_0001>
module attributes {stable_mosaic.version = 11 : i64} {
  func.func @_classification_kernel(%arg0: i32, %arg1: i32, %arg2: memref<8x4x8xf32, #tpu.memory_space<vmem>>, %arg3: memref<8x128xi32, #tpu.memory_space<vmem>>, %arg4: memref<8x4xf32, #tpu.memory_space<vmem>>) attributes {dimension_semantics = [#tpu.dimension_semantics<parallel>, #tpu.dimension_semantics<arbitrary>], iteration_bounds = array<i64: 1, 1>, scalar_prefetch = 0 : i64, scratch_operands = 1 : i64, tpu.core_type = #tpu.core_type<tc>, window_params = [{transform_indices = @transform_0, window_bounds = array<i64: 8, 4, 8>}, {transform_indices = @transform_1, window_bounds = array<i64: 8, 128>}]} {
    %c0_i32 = arith.constant 0 : i32
    %0 = arith.cmpi eq, %arg1, %c0_i32 : i32
    %1 = arith.extui %0 : i1 to i32
    %c0_i32_0 = arith.constant 0 : i32
    %2 = arith.cmpi ne, %1, %c0_i32_0 : i32
    scf.if %2 {
      %cst_9 = arith.constant 0.000000e+00 : f32
      %11 = vector.broadcast %cst_9 : f32 to vector<8x4xf32>
      %c0_10 = arith.constant 0 : index
      %c0_11 = arith.constant 0 : index
      %12 = vector.load %arg4[%c0_10, %c0_11] : memref<8x4xf32, #tpu.memory_space<vmem>>, vector<8x4xf32>
      tpu.vector_store %arg4[%c0_10, %c0_11], %11 {strides = array<i32>} : memref<8x4xf32, #tpu.memory_space<vmem>>, vector<8x4xf32>,
    } else {
    }
    %c0 = arith.constant 0 : index
    %c0_1 = arith.constant 0 : index
    %3 = vector.load %arg4[%c0, %c0_1] : memref<8x4xf32, #tpu.memory_space<vmem>>, vector<8x4xf32>
    %c0_2 = arith.constant 0 : index
    %c0_3 = arith.constant 0 : index
    %c0_4 = arith.constant 0 : index
    %4 = vector.load %arg2[%c0_2, %c0_3, %c0_4] : memref<8x4x8xf32, #tpu.memory_space<vmem>>, vector<8x4x8xf32>
    %cst = arith.constant dense<0.000000e+00> : vector<8x4xf32>
    %5 = vector.multi_reduction <add>, %4, %cst [2] : vector<8x4x8xf32> to vector<8x4xf32>
    %6 = arith.addf %3, %5 : vector<8x4xf32>
    %c0_5 = arith.constant 0 : index
    %c0_6 = arith.constant 0 : index
    %7 = vector.load %arg4[%c0_5, %c0_6] : memref<8x4xf32, #tpu.memory_space<vmem>>, vector<8x4xf32>
    tpu.vector_store %arg4[%c0_5, %c0_6], %6 {strides = array<i32>} : memref<8x4xf32, #tpu.memory_space<vmem>>, vector<8x4xf32>,
    %c0_i32_7 = arith.constant 0 : i32
    %8 = arith.cmpi eq, %arg1, %c0_i32_7 : i32
    %9 = arith.extui %8 : i1 to i32
    %c0_i32_8 = arith.constant 0 : i32
    %10 = arith.cmpi ne, %9, %c0_i32_8 : i32
    scf.if %10 {
      %c0_9 = arith.constant 0 : index
      %c0_10 = arith.constant 0 : index
      %11 = vector.load %arg4[%c0_9, %c0_10] : memref<8x4xf32, #tpu.memory_space<vmem>>, vector<8x4xf32>
      %12 = tpu.iota {dimensions = array<i32: 1>} : vector<8x4xi32>
      %cst_11 = arith.constant dense<0xFF800000> : vector<8xf32>
      %13 = vector.multi_reduction <maximumf>, %11, %cst_11 [1] : vector<8x4xf32> to vector<8xf32>
      %14 = vector.shape_cast %13 : vector<8xf32> to vector<8x1xf32>
      %15 = vector.broadcast %14 : vector<8x1xf32> to vector<8x4xf32>
      %16 = arith.cmpf oge, %11, %15 : vector<8x4xf32>
      %c4_i32 = arith.constant 4 : i32
      %17 = vector.broadcast %c4_i32 : i32 to vector<8x4xi32>
      %18 = arith.select %16, %12, %17 : vector<8x4xi1>, vector<8x4xi32>
      %cst_12 = arith.constant dense<2147483647> : vector<8xi32>
      %19 = vector.multi_reduction <minsi>, %18, %cst_12 [1] : vector<8x4xi32> to vector<8xi32>
      %20 = vector.shape_cast %19 : vector<8xi32> to vector<8x1xi32>
      %21 = vector.shape_cast %20 : vector<8x1xi32> to vector<8x1xi32>
      %22 = vector.broadcast %21 : vector<8x1xi32> to vector<8x128xi32>
      %c0_13 = arith.constant 0 : index
      %c0_14 = arith.constant 0 : index
      %23 = vector.load %arg3[%c0_13, %c0_14] : memref<8x128xi32, #tpu.memory_space<vmem>>, vector<8x128xi32>
      tpu.vector_store %arg3[%c0_13, %c0_14], %22 {strides = array<i32>} : memref<8x128xi32, #tpu.memory_space<vmem>>, vector<8x128xi32>,
    } else {
    }
    return
  }
  func.func @transform_0(%arg0: i32, %arg1: i32) -> (i32, i32, i32) {
    %c0_i32 = arith.constant 0 : i32
    %c0_i32_0 = arith.constant 0 : i32
    return %arg0, %c0_i32, %arg1 : i32, i32, i32
  }
  func.func @transform_1(%arg0: i32, %arg1: i32) -> (i32, i32) {
    %c0_i32 = arith.constant 0 : i32
    %c0_i32_0 = arith.constant 0 : i32
    return %arg0, %c0_i32 : i32, i32
  }
}

</mosaic_0001>

<llo_original>
// kernel: tpu_custom_call.1
$region0: #{tpu_custom_call.1}
  #allocation0 [shape = 'u32[]', space=smem, size = 0x4, offset = 0x4, fixed_abs, tag = 'smem constant byte address 0x4 - core index']
  #allocation1 [shape = 'u32[144,128]{1,0:T(1,128)}', space=vmem, size = 0x12000, scoped, tag = 'internal scratch']
  #allocation2 [shape = 'f32[8,4]{1,0:T(8,128)}', space=vmem, size = 0x1000, scoped, tag = 'scratch operand']
  %s0 = inlined_call_operand.hbm [shape: f32[8,4,8], index: 0, kind: input, shape index: {}]
  %s1 = inlined_call_operand.hbm [shape: s32[8,128], index: 1, kind: output, shape index: {}]
  %s2 = sld [smem:[#allocation0]]
  $region26: #{tpu_custom_call.1} parent=0
    _
  %s4 = ssub.s32 1, %s2
  %s5 = scalar_select 0, %s4, %s2
  $region1: #{tpu_custom_call.1} parent=0
    #allocation3 [shape = 'u8[16384]{0}', space=vmem, size = 0x4000, scoped, tag = 'input window, operand 0, single buffered']
    #allocation4 [shape = 's32[1]{0}', space=sflag, size = 0x4, scoped, tag = 'scoped memory for tpu_custom_call.1']
    #allocation5 [shape = 's32[1]{0}', space=sflag, size = 0x4, scoped, tag = 'scoped memory for tpu_custom_call.1']
    #allocation6 [shape = 'u8[4096]{0}', space=vmem, size = 0x1000, scoped, tag = 'output window, operand 0, single buffered']
    %6 = vsyncpa [#allocation4], 0
    %7 = vsyncpa [#allocation5], 0
    // Predicated region
    $region2: #{tpu_custom_call.1} parent=1 // pred_check
      _
    $region3: #{tpu_custom_call.1} parent=1 // pred_check_branch
      %9 = sbr.rel (0) target = $region5
    $region4: #{tpu_custom_call.1} parent=1 // pred_region
      %s11 = ssub.s32 512, 512
      %12 = vsyncadd [#allocation4], %s11
      %s13 = sshll.u32 [#allocation3], 4
      %s14 = int_to_ptr.vmem [resolvable:$true] %s13
      %19 = dma.hbm_to_vmem [thread:$0]  %s0, 512, %s14, [#allocation4], 64, 64, 4
    $region5: #{tpu_custom_call.1} parent=1 // pred_fallthru
      _
    // Predicated region
    $region6: #{tpu_custom_call.1} parent=1 // pred_check
      _
    $region7: #{tpu_custom_call.1} parent=1 // pred_check_branch
      %21 = sbr.rel (0) target = $region9
    $region8: #{tpu_custom_call.1} parent=1 // pred_region
      %22 = dma.done [#allocation4], 512
    $region9: #{tpu_custom_call.1} parent=1 // pred_fallthru
      _
    %p23 = scmp.eq.s32.totalorder 0, 0
    // Predicated region
    $region10: #{tpu_custom_call.1} parent=1 // pred_check
      %p24 = pneg %p23
    $region11: #{tpu_custom_call.1} parent=1 // pred_check_branch
      %26 = sbr.rel (%p24) target = $region13
    $region12: #{tpu_custom_call.1} parent=1 // pred_region
      %vm27 = vcmask 31744
      %28 = vst.msk [vmem:[#allocation2] sm:$0xff] %vm27, 0.0
    $region13: #{tpu_custom_call.1} parent=1 // pred_fallthru
      _
    %v29 = vld [vmem:[#allocation2] sm:$0xff]
    %v30 = vld [vmem:[#allocation3] sm:$0xf]
    %v31 = vld [vmem:[#allocation3 + $0x4] sm:$0xf]
    %v32 = vld [vmem:[#allocation3 + $0x8] sm:$0xf]
    %v33 = vld [vmem:[#allocation3 + $0xc] sm:$0xf]
    %v34 = vld [vmem:[#allocation3 + $0x10] sm:$0xf]
    %v35 = vld [vmem:[#allocation3 + $0x14] sm:$0xf]
    %v36 = vld [vmem:[#allocation3 + $0x18] sm:$0xf]
    %v37 = vld [vmem:[#allocation3 + $0x1c] sm:$0xf]
    %vm38 = vcmask 60416
    %v39 = vsel %vm38, %v30, 0.0
    %40 = vadd.xlane.f32.xlu0 %v39
    %v41 = vpop.xlane.xlu0 %40
    %v42 = vsel %vm38, %v31, 0.0
    %43 = vadd.xlane.f32.xlu0 %v42
    %v44 = vpop.xlane.xlu0 %43
    %v45 = vsel %vm38, %v32, 0.0
    %46 = vadd.xlane.f32.xlu0 %v45
    %v47 = vpop.xlane.xlu0 %46
    %v48 = vsel %vm38, %v33, 0.0
    %49 = vadd.xlane.f32.xlu0 %v48
    %v50 = vpop.xlane.xlu0 %49
    %v51 = vsel %vm38, %v34, 0.0
    %52 = vadd.xlane.f32.xlu0 %v51
    %v53 = vpop.xlane.xlu0 %52
    %v54 = vsel %vm38, %v35, 0.0
    %55 = vadd.xlane.f32.xlu0 %v54
    %v56 = vpop.xlane.xlu0 %55
    %v57 = vsel %vm38, %v36, 0.0
    %58 = vadd.xlane.f32.xlu0 %v57
    %v59 = vpop.xlane.xlu0 %58
    %v60 = vsel %vm38, %v37, 0.0
    %61 = vadd.xlane.f32.xlu0 %v60
    %v62 = vpop.xlane.xlu0 %61
    %v71 = vlaneseq
    %v72 = vand.u32 %v71, 127
    %v73 = vlaneseq
    %v74 = vshrl.u32 %v73, 7
    %v75 = vsub.s32 %v72, %v74
    %v76 = vrot.slane %v41, %v75
    %v77 = vlaneseq
    %v78 = vshrl.u32 %v77, 7
    %v79 = vsub.s32 %v72, %v78
    %v80 = vrot.slane %v44, %v79
    %v81 = vlaneseq
    %v82 = vshrl.u32 %v81, 7
    %v83 = vsub.s32 %v72, %v82
    %v84 = vrot.slane %v47, %v83
    %v85 = vlaneseq
    %v86 = vshrl.u32 %v85, 7
    %v87 = vsub.s32 %v72, %v86
    %v88 = vrot.slane %v50, %v87
    %v89 = vlaneseq
    %v90 = vshrl.u32 %v89, 7
    %v91 = vsub.s32 %v72, %v90
    %v92 = vrot.slane %v53, %v91
    %v93 = vlaneseq
    %v94 = vshrl.u32 %v93, 7
    %v95 = vsub.s32 %v72, %v94
    %v96 = vrot.slane %v56, %v95
    %v97 = vlaneseq
    %v98 = vshrl.u32 %v97, 7
    %v99 = vsub.s32 %v72, %v98
    %v100 = vrot.slane %v59, %v99
    %v101 = vlaneseq
    %v102 = vshrl.u32 %v101, 7
    %v103 = vsub.s32 %v72, %v102
    %v104 = vrot.slane %v62, %v103
    %vm105 = vcmask 1041409
    %v106 = vsel %vm105, %v80, %v76
    %vm107 = vcmask 1042434
    %v108 = vsel %vm107, %v84, %v106
    %vm109 = vcmask 1043459
    %v110 = vsel %vm109, %v88, %v108
    %vm111 = vcmask 1044484
    %v112 = vsel %vm111, %v92, %v110
    %vm113 = vcmask 1045509
    %v114 = vsel %vm113, %v96, %v112
    %vm115 = vcmask 1046534
    %v116 = vsel %vm115, %v100, %v114
    %vm117 = vcmask 1047559
    %v118 = vsel %vm117, %v104, %v116
    %v120 = vadd.f32 %v29, %v118
    %vm121 = vcmask 31744
    %122 = vst.msk [vmem:[#allocation2] sm:$0xff] %vm121, %v120
    // Predicated region
    $region14: #{tpu_custom_call.1} parent=1 // pred_check
      %p123 = pneg %p23
    $region15: #{tpu_custom_call.1} parent=1 // pred_check_branch
      %125 = sbr.rel (%p123) target = $region17
    $region16: #{tpu_custom_call.1} parent=1 // pred_region
      %v126 = vld [vmem:[#allocation2] sm:$0xff]
      %v127 = vsel %vm121, %v126, -inf
      %128 = vmax.xlane.f32.xlu0 %v127
      %v129 = vpop.xlane.xlu0 %128
      %vm130 = vcmp.ge.f32.partialorder %v126, %v129
      %v131 = vsel %vm130, %v72, 4
      %v132 = vsel %vm121, %v131, 2147483647
      %v133 = vand.u32 %v132, 65535
      %v134 = vshra.s32 %v132, 16
      %v135 = vcvt.s32.f32 %v133
      %v136 = vcvt.s32.f32 %v134
      %137 = vmin.xlane.f32.xlu0 %v136
      %v138 = vpop.xlane.xlu0 %137
      %vm139 = vcmp.eq.f32.partialorder %v136, %v138
      %v140 = vsel %vm139, %v135, inf
      %141 = vmin.xlane.f32.xlu0 %v140
      %v142 = vpop.xlane.xlu0 %141
      %v143 = vcvt.f32.s32 %v142
      %v144 = vcvt.f32.s32 %v138
      %v145 = vshll.u32 %v144, 16
      %v146 = vadd.s32 %v145, %v143
      %147 = vst [vmem:[#allocation6] sm:$0xff] %v146
    $region17: #{tpu_custom_call.1} parent=1 // pred_fallthru
      _
    // Predicated region
    $region18: #{tpu_custom_call.1} parent=1 // pred_check
      _
    $region19: #{tpu_custom_call.1} parent=1 // pred_check_branch
      %149 = sbr.rel (0) target = $region21
    $region20: #{tpu_custom_call.1} parent=1 // pred_region
      %s151 = ssub.s32 128, 128
      %152 = vsyncadd [#allocation5], %s151
      %s154 = sshll.u32 [#allocation6], 4
      %s155 = int_to_ptr.vmem [resolvable:$true] %s154
      %157 = dma.vmem_to_hbm [thread:$0]  %s155, 128, %s1, [#allocation5]
    $region21: #{tpu_custom_call.1} parent=1 // pred_fallthru
      _
    // Predicated region
    $region22: #{tpu_custom_call.1} parent=1 // pred_check
      _
    $region23: #{tpu_custom_call.1} parent=1 // pred_check_branch
      %159 = sbr.rel (0) target = $region25
    $region24: #{tpu_custom_call.1} parent=1 // pred_region
      %160 = dma.done [#allocation5], 128
    $region25: #{tpu_custom_call.1} parent=1 // pred_fallthru
      _
    %161 = vsyncpa [#allocation4], 1
    %162 = vsyncpa [#allocation5], 1

</llo_original>
